<compile_context>
chip_gen: v7x
topology: tpu7x:2x2x1
jax: 0.10.0
libtpu: 0.0.40
codegen_flags: <defaults>
</compile_context>

<pallas_src>
import functools

import jax
import jax.numpy as jnp
from jax.experimental import pallas as pl
from jax.experimental.pallas import tpu as pltpu


def _round_up(x, m):
    return ((x + m - 1) // m) * m


def _linear_kernel(x_ref, w_ref, b_ref, o_ref):
    # x_ref: (TM, K)  w_ref: (K, N_pad)  b_ref: (1, N)  o_ref: (TM, N)
    n = o_ref.shape[-1]
    acc = jnp.dot(x_ref[...], w_ref[...], preferred_element_type=jnp.float32)
    o_ref[...] = (acc[:, :n] + b_ref[...]).astype(o_ref.dtype)


def prepare_output_layer_params(out_w, out_b, n_pad=None):
    """One-time parameter prep (do NOT redo this per forward call).

    out_w: (N, K) PyTorch nn.Linear weight layout; out_b: (N,)
    Returns:
      w_t_pad: (K, N_pad)  pre-transposed, zero-padded to a lane-dense MXU
               operand (padded columns contribute exact zeros and are sliced
               off inside the kernel before the store).
      b_2d:    (1, N)      bias, unpadded.
    """
    n, k = out_w.shape
    if n_pad is None:
        n_pad = max(128, _round_up(n, 128))
    w_t = out_w.T.astype(jnp.float32)                       # (K, N)
    w_t_pad = jnp.zeros((k, n_pad), jnp.float32).at[:, :n].set(w_t)
    b_2d = out_b.astype(jnp.float32).reshape(1, n)
    return w_t_pad, b_2d


def _choose_tm(m, max_tm):
    """Row-tile size: multiple of 8 (f32 sublane), large to amortize the
    ~0.35us per-grid-step overhead, split so v7x's 2 TCs both get work."""
    m8 = _round_up(m, 8)
    if m8 > max_tm:
        return max_tm
    if m8 >= 4096:
        # Fits in <= 2 big tiles: split in two so the "parallel" grid axis can
        # be sharded across v7x's two TensorCores.
        return _round_up((m8 + 1) // 2, 8)
    return m8


def output_layer_pallas(x_flat, w_t_pad, b_2d, max_tm=8192):
    """x_flat: (M, K), w_t_pad: (K, N_pad), b_2d: (1, N) -> (M, N)."""
    M, K = x_flat.shape
    _, N_pad = w_t_pad.shape
    N = b_2d.shape[-1]

    tm = _choose_tm(M, max_tm)
    grid = (pl.cdiv(M, tm),)

    # Advisory cost for XLA scheduling: real work, not the padded MXU shape.
    cost = pl.CostEstimate(
        flops=2 * M * K * N,
        transcendentals=0,
        bytes_accessed=4 * (M * K + K * N + M * N),
    )

    return pl.pallas_call(
        _linear_kernel,
        out_shape=jax.ShapeDtypeStruct((M, N), x_flat.dtype),
        grid=grid,
        in_specs=[
            pl.BlockSpec((tm, K), lambda i: (i, 0)),       # x: streamed over M
            pl.BlockSpec((K, N_pad), lambda i: (0, 0)),    # W^T: resident (MXU operand)
            pl.BlockSpec((1, N), lambda i: (0, 0)),        # bias: resident
        ],
        out_specs=pl.BlockSpec((tm, N), lambda i: (i, 0)), # unpadded writeback
        compiler_params=pltpu.CompilerParams(
            dimension_semantics=("parallel",),             # megacore on v7x
            vmem_limit_bytes=32 * 1024 * 1024,
        ),
        cost_estimate=cost,
    )(x_flat, w_t_pad, b_2d)


@functools.partial(jax.jit, static_argnames=("input_dim", "use_pallas"))
def dec_mtan_witouirr_forward(ENCoutput, time_steps, w_t_pad, b_2d,
                              input_dim, use_pallas=None, causal_mask=None):
    """Matches dec_mtan_witouirr.forward: OutputLayer(ENCoutput).

    ENCoutput:  (batch, seq_len, ENCoutput_dim)
    w_t_pad:    (ENCoutput_dim, N_pad)   pre-transposed + lane-padded weight
    b_2d:       (1, N)                   bias
    time_steps / causal_mask are accepted but unused (as in the reference).
    use_pallas: None = auto (Pallas only when the problem is big enough to be
                bandwidth-bound); True/False to force a path.
    """
    batch, seq_len, enc_dim = ENCoutput.shape
    M = batch * seq_len
    N = b_2d.shape[-1]
    if use_pallas is None:
        use_pallas = M >= 2048   # below this, pallas_call fixed cost dominates

    x_flat = ENCoutput.reshape(M, enc_dim)
    if use_pallas:
        y = output_layer_pallas(x_flat, w_t_pad, b_2d)
    else:
        # Small-M fast path: plain XLA fused dot.
        y = x_flat @ w_t_pad[:, :N] + b_2d
    return y.reshape(batch, seq_len, N)


def _torch_linear_init(key, fan_out, fan_in):
    """Deterministic init mimicking nn.Linear default (uniform(-1/sqrt(fan_in), ..))."""
    kw, kb = jax.random.split(key)
    bound = 1.0 / jnp.sqrt(jnp.float32(fan_in))
    w = jax.random.uniform(kw, (fan_out, fan_in), jnp.float32, -bound, bound)
    b = jax.random.uniform(kb, (fan_out,), jnp.float32, -bound, bound)
    return w, b


if __name__ == "__main__":
    # Small shapes consistent with the module:
    #   input_dim=4, ENCoutput_dim=32, embed_time=16, num_heads=1
    #   ENCoutput: (batch=2, seq=8, ENCoutput_dim=32)
    batch, seq_len = 2, 8
    input_dim, enc_out_dim, embed_time = 4, 32, 16

    key = jax.random.PRNGKey(0)
    k_x, k_t, k_out, k_x2 = jax.random.split(key, 4)

    ENCoutput = jax.random.normal(k_x, (batch, seq_len, enc_out_dim), jnp.float32)
    time_steps = jax.random.uniform(k_t, (batch, seq_len), jnp.float32)

    # OutputLayer = nn.Linear(ENCoutput_dim, input_dim)
    out_w, out_b = _torch_linear_init(k_out, input_dim, enc_out_dim)
    # DECmTAN / periodic / linear submodules are unused in forward().

    # One-time parameter prep: transpose + lane-pad the weight, 2-D bias.
    w_t_pad, b_2d = prepare_output_layer_params(out_w, out_b)

    # --- 1) Force the Pallas path at the module's (tiny) example shape -------
    y = dec_mtan_witouirr_forward(ENCoutput, time_steps, w_t_pad, b_2d,
                                  input_dim, use_pallas=True)
    y = jax.block_until_ready(y)
    y_ref = ENCoutput @ out_w.T + out_b
    assert y.shape == (batch, seq_len, input_dim)
    assert jnp.allclose(y, y_ref, atol=1e-5, rtol=1e-5)

    # Default (auto) path at small M takes the XLA fast path — same numerics.
    y_auto = jax.block_until_ready(
        dec_mtan_witouirr_forward(ENCoutput, time_steps, w_t_pad, b_2d,
                                  input_dim))
    assert jnp.allclose(y_auto, y_ref, atol=1e-5, rtol=1e-5)

    # --- 2) Exercise the multi-tile streaming path (ragged last tile) --------
    b2, s2 = 2, 8200                                    # M = 16400 -> grid of 3
    ENC2 = jax.random.normal(k_x2, (b2, s2, enc_out_dim), jnp.float32)
    t2 = jnp.zeros((b2, s2), jnp.float32)
    y2 = jax.block_until_ready(
        dec_mtan_witouirr_forward(ENC2, t2, w_t_pad, b_2d, input_dim))
    y2_ref = ENC2 @ out_w.T + out_b
    assert y2.shape == (b2, s2, input_dim)
    assert jnp.allclose(y2, y2_ref, atol=1e-4, rtol=1e-4)

    print("KERNEL_OK")
</pallas_src>

<mosaic_0001>
module attributes {stable_mosaic.version = 11 : i64} {
  func.func @_linear_kernel(%arg0: i32, %arg1: memref<16x32xf32, #tpu.memory_space<vmem>>, %arg2: memref<32x128xf32, #tpu.memory_space<vmem>>, %arg3: memref<1x4xf32, #tpu.memory_space<vmem>>, %arg4: memref<16x4xf32, #tpu.memory_space<vmem>>) attributes {dimension_semantics = [#tpu.dimension_semantics<parallel>], iteration_bounds = array<i64: 1>, scalar_prefetch = 0 : i64, scratch_operands = 0 : i64, tpu.core_type = #tpu.core_type<tc>, window_params = [{transform_indices = @transform_0, window_bounds = array<i64: 16, 32>}, {pipeline_mode = #tpu.pipeline_mode<synchronous>, transform_indices = @transform_1, window_bounds = array<i64: 32, 128>}, {pipeline_mode = #tpu.pipeline_mode<synchronous>, transform_indices = @transform_2, window_bounds = array<i64: 1, 4>}, {transform_indices = @transform_3, window_bounds = array<i64: 16, 4>}]} {
    %c0 = arith.constant 0 : index
    %c0_0 = arith.constant 0 : index
    %0 = vector.load %arg1[%c0, %c0_0] : memref<16x32xf32, #tpu.memory_space<vmem>>, vector<16x32xf32>
    %c0_1 = arith.constant 0 : index
    %c0_2 = arith.constant 0 : index
    %1 = vector.load %arg2[%c0_1, %c0_2] : memref<32x128xf32, #tpu.memory_space<vmem>>, vector<32x128xf32>
    %cst = arith.constant dense<0.000000e+00> : vector<16x128xf32>
    %2 = tpu.matmul %0, %1, %cst {dimension_numbers = #tpu.dot_dimension_numbers<[1], [0], [0], [1], [0, 0, 1, 1], [], []>} : vector<16x32xf32>, vector<32x128xf32>, vector<16x128xf32> -> vector<16x128xf32>
    %3 = vector.extract_strided_slice %2 {offsets = [0, 0], sizes = [16, 4], strides = [1, 1]} : vector<16x128xf32> to vector<16x4xf32>
    %c0_3 = arith.constant 0 : index
    %c0_4 = arith.constant 0 : index
    %4 = vector.load %arg3[%c0_3, %c0_4] : memref<1x4xf32, #tpu.memory_space<vmem>>, vector<1x4xf32>
    %5 = vector.broadcast %4 : vector<1x4xf32> to vector<16x4xf32>
    %6 = arith.addf %3, %5 : vector<16x4xf32>
    %c0_5 = arith.constant 0 : index
    %c0_6 = arith.constant 0 : index
    %7 = vector.load %arg4[%c0_5, %c0_6] : memref<16x4xf32, #tpu.memory_space<vmem>>, vector<16x4xf32>
    tpu.vector_store %arg4[%c0_5, %c0_6], %6 {strides = array<i32>} : memref<16x4xf32, #tpu.memory_space<vmem>>, vector<16x4xf32>,
    return
  }
  func.func @transform_0(%arg0: i32) -> (i32, i32) {
    %c0_i32 = arith.constant 0 : i32
    %c0_i32_0 = arith.constant 0 : i32
    return %arg0, %c0_i32 : i32, i32
  }
  func.func @transform_1(%arg0: i32) -> (i32, i32) {
    %c0_i32 = arith.constant 0 : i32
    %c0_i32_0 = arith.constant 0 : i32
    %c0_i32_1 = arith.constant 0 : i32
    return %c0_i32, %c0_i32_0 : i32, i32
  }
  func.func @transform_2(%arg0: i32) -> (i32, i32) {
    %c0_i32 = arith.constant 0 : i32
    %c0_i32_0 = arith.constant 0 : i32
    %c0_i32_1 = arith.constant 0 : i32
    return %c0_i32, %c0_i32_0 : i32, i32
  }
  func.func @transform_3(%arg0: i32) -> (i32, i32) {
    %c0_i32 = arith.constant 0 : i32
    %c0_i32_0 = arith.constant 0 : i32
    return %arg0, %c0_i32 : i32, i32
  }
}

</mosaic_0001>

<llo_original>
// kernel: dec_mtan_witouirr_forward.1
$region0: #{dec_mtan_witouirr_forward.1}
  #allocation0 [shape = 'u32[]', space=smem, size = 0x4, offset = 0x4, fixed_abs, tag = 'smem constant byte address 0x4 - core index']
  #allocation1 [shape = 'u32[144,128]{1,0:T(1,128)}', space=vmem, size = 0x12000, scoped, tag = 'internal scratch']
  %s0 = inlined_call_operand.hbm [shape: f32[16,32], index: 0, kind: input, shape index: {}]
  %s1 = inlined_call_operand.hbm [shape: f32[32,128], index: 1, kind: input, shape index: {}]
  %s2 = inlined_call_operand.vmem [shape: f32[1,4], index: 2, kind: input, shape index: {}]
  %s3 = inlined_call_operand.vmem [shape: f32[16,4], index: 3, kind: output, shape index: {}]
  %s4 = sld [smem:[#allocation0]]
  $region30: #{dec_mtan_witouirr_forward.1} parent=0
    _
  %s6 = ssub.s32 1, %s4
  %s7 = scalar_select 0, %s6, %s4
  $region1: #{dec_mtan_witouirr_forward.1} parent=0
    #allocation2 [shape = 'u8[8192]{0}', space=vmem, size = 0x2000, scoped, tag = 'input window, operand 0, single buffered']
    #allocation3 [shape = 's32[1]{0}', space=sflag, size = 0x4, scoped, tag = 'scoped memory for dec_mtan_witouirr_forward.1']
    #allocation4 [shape = 'u8[16384]{0}', space=vmem, size = 0x4000, scoped, tag = 'input window, operand 1, single buffered']
    #allocation5 [shape = 's32[1]{0}', space=sflag, size = 0x4, scoped, tag = 'scoped memory for dec_mtan_witouirr_forward.1']
    %8 = vsyncpa [#allocation3], 0
    %9 = vsyncpa [#allocation5], 0
    // Predicated region
    $region2: #{dec_mtan_witouirr_forward.1} parent=1 // pred_check
      _
    $region3: #{dec_mtan_witouirr_forward.1} parent=1 // pred_check_branch
      %11 = sbr.rel (0) target = $region5
    $region4: #{dec_mtan_witouirr_forward.1} parent=1 // pred_region
      %s13 = ssub.s32 256, 256
      %14 = vsyncadd [#allocation3], %s13
      %s15 = sshll.u32 [#allocation2], 4
      %s16 = int_to_ptr.vmem [resolvable:$true] %s15
      %21 = dma.hbm_to_vmem [thread:$0]  %s0, 256, %s16, [#allocation3], 128, 128, 8
    $region5: #{dec_mtan_witouirr_forward.1} parent=1 // pred_fallthru
      _
    // Predicated region
    $region6: #{dec_mtan_witouirr_forward.1} parent=1 // pred_check
      _
    $region7: #{dec_mtan_witouirr_forward.1} parent=1 // pred_check_branch
      %23 = sbr.rel (0) target = $region9
    $region8: #{dec_mtan_witouirr_forward.1} parent=1 // pred_region
      %s25 = ssub.s32 512, 512
      %26 = vsyncadd [#allocation5], %s25
      %s27 = sshll.u32 [#allocation4], 4
      %s28 = int_to_ptr.vmem [resolvable:$true] %s27
      %33 = dma.hbm_to_vmem [thread:$0]  %s1, 512, %s28, [#allocation5], 128, 128, 8
    $region9: #{dec_mtan_witouirr_forward.1} parent=1 // pred_fallthru
      _
    // Predicated region
    $region10: #{dec_mtan_witouirr_forward.1} parent=1 // pred_check
      _
    $region11: #{dec_mtan_witouirr_forward.1} parent=1 // pred_check_branch
      %35 = sbr.rel (0) target = $region13
    $region12: #{dec_mtan_witouirr_forward.1} parent=1 // pred_region
      _
    $region13: #{dec_mtan_witouirr_forward.1} parent=1 // pred_fallthru
      _
    // Predicated region
    $region14: #{dec_mtan_witouirr_forward.1} parent=1 // pred_check
      _
    $region15: #{dec_mtan_witouirr_forward.1} parent=1 // pred_check_branch
      %37 = sbr.rel (0) target = $region17
    $region16: #{dec_mtan_witouirr_forward.1} parent=1 // pred_region
      %38 = dma.done [#allocation3], 256
    $region17: #{dec_mtan_witouirr_forward.1} parent=1 // pred_fallthru
      _
    // Predicated region
    $region18: #{dec_mtan_witouirr_forward.1} parent=1 // pred_check
      _
    $region19: #{dec_mtan_witouirr_forward.1} parent=1 // pred_check_branch
      %40 = sbr.rel (0) target = $region21
    $region20: #{dec_mtan_witouirr_forward.1} parent=1 // pred_region
      %41 = dma.done [#allocation5], 512
    $region21: #{dec_mtan_witouirr_forward.1} parent=1 // pred_fallthru
      _
    %v42 = vld [vmem:[#allocation2] sm:$0xff]
    %v43 = vld [vmem:[#allocation2 + $0x8] sm:$0xff]
    %v44 = vld [vmem:[#allocation4] sm:$0xff]
    %v45 = vld [vmem:[#allocation4 + $0x8] sm:$0xff]
    %v46 = vld [vmem:[#allocation4 + $0x10] sm:$0xff]
    %v47 = vld [vmem:[#allocation4 + $0x18] sm:$0xff]
    %vm48 = vcmask 261120
    %v50 = vsel %vm48, %v42, 0
    %v53 = vsel %vm48, %v43, 0
    %55 = vmatprep.subr.mxu0 0.0
    %56 = vmatpush1.msra.mxu0 %v44
    %57 = vmatprep.subr.mxu0 0.0
    %58 = vmatpush1.msra.mxu0 %v45
    %59 = vmatprep.subr.mxu0 0.0
    %60 = vmatpush1.msra.mxu0 %v46
    %61 = vmatprep.subr.mxu0 0.0
    %62 = vmatpush1.msra.mxu0 %v47
    %63 = vmatprep.subr.mxu0 0.0
    %64 = vmatpush1.msra.mxu0 0.0
    %65 = vmatprep.subr.mxu0 0.0
    %66 = vmatpush1.msra.mxu0 0.0
    %67 = vmatprep.subr.mxu0 0.0
    %68 = vmatpush1.msra.mxu0 0.0
    %69 = vmatprep.subr.mxu0 0.0
    %70 = vmatpush1.msra.mxu0 0.0
    %71 = vmatprep.subr.mxu0 0.0
    %72 = vmatpush1.msra.mxu0 0.0
    %73 = vmatprep.subr.mxu0 0.0
    %74 = vmatpush1.msra.mxu0 0.0
    %75 = vmatprep.subr.mxu0 0.0
    %76 = vmatpush1.msra.mxu0 0.0
    %77 = vmatprep.subr.mxu0 0.0
    %78 = vmatpush1.msra.mxu0 0.0
    %79 = vmatprep.subr.mxu0 0.0
    %80 = vmatpush1.msra.mxu0 0.0
    %81 = vmatprep.subr.mxu0 0.0
    %82 = vmatpush1.msra.mxu0 0.0
    %83 = vmatprep.subr.mxu0 0.0
    %84 = vmatpush1.msra.mxu0 0.0
    %85 = vmatprep.subr.mxu0 0.0
    %86 = vmatpush1.msra.mxu0 0.0
    %87 = vmatprep.subr.mxu0 0.0
    %88 = vmatpush1.msra.mxu0 0.0
    %89 = vmatprep.subr.mxu0 0.0
    %90 = vmatpush1.msra.mxu0 0.0
    %91 = vmatprep.subr.mxu0 0.0
    %92 = vmatpush1.msra.mxu0 0.0
    %93 = vmatprep.subr.mxu0 0.0
    %94 = vmatpush1.msra.mxu0 0.0
    %95 = vmatprep.subr.mxu0 0.0
    %96 = vmatpush1.msra.mxu0 0.0
    %97 = vmatprep.subr.mxu0 0.0
    %98 = vmatpush1.msra.mxu0 0.0
    %99 = vmatprep.subr.mxu0 0.0
    %100 = vmatpush1.msra.mxu0 0.0
    %101 = vmatprep.subr.mxu0 0.0
    %102 = vmatpush1.msra.mxu0 0.0
    %103 = vmatprep.subr.mxu0 0.0
    %104 = vmatpush1.msra.mxu0 0.0
    %105 = vmatprep.subr.mxu0 0.0
    %106 = vmatpush1.msra.mxu0 0.0
    %107 = vmatprep.subr.mxu0 0.0
    %108 = vmatpush1.msra.mxu0 0.0
    %109 = vmatprep.subr.mxu0 0.0
    %110 = vmatpush1.msra.mxu0 0.0
    %111 = vmatprep.subr.mxu0 0.0
    %112 = vmatpush1.msra.mxu0 0.0
    %113 = vmatprep.subr.mxu0 0.0
    %114 = vmatpush1.msra.mxu0 0.0
    %115 = vmatprep.subr.mxu0 0.0
    %116 = vmatpush1.msra.mxu0 0.0
    %117 = vmatprep.subr.mxu0 0.0
    %118 = vmatpush1.msra.mxu0 0.0
    %119 = vmatprep.mubr.f32.mxu0 0.0
    %120 = vmatmul.mubr.f32.gmra.mrb[0].mxu0 %v50
    %v121 = vpop.f32.mrb[0].mxu0
    %v122 = vadd.f32 0.0, %v121
    %v123 = vpop.f32.mrb[0].mxu0
    %124 = vmatprep.mubr.f32.mxu0 0.0
    %125 = vmatmul.mubr.f32.gmra.mrb[0].mxu0 %v53
    %v126 = vpop.f32.mrb[0].mxu0
    %v127 = vadd.f32 0.0, %v126
    %v128 = vpop.f32.mrb[0].mxu0
    %129 = vdwg.mxu0
    %v130 = vld [vmem:[%s2] sm:$0x1]
    %v132 = vlaneseq
    %v133 = vshrl.u32 %v132, 7
    %v134 = vsub.s32 0, %v133
    %v135 = vrot.slane %v130, %v134
    %v137 = vadd.f32 %v122, %v135
    %v138 = vadd.f32 %v127, %v135
    %vm139 = vcmask 31744
    %140 = vst.msk [vmem:[%s3] sm:$0xff] %vm139, %v137
    %141 = vst.msk [vmem:[%s3 + $0x8] sm:$0xff] %vm139, %v138
    // Predicated region
    $region22: #{dec_mtan_witouirr_forward.1} parent=1 // pred_check
      _
    $region23: #{dec_mtan_witouirr_forward.1} parent=1 // pred_check_branch
      %143 = sbr.rel (0) target = $region25
    $region24: #{dec_mtan_witouirr_forward.1} parent=1 // pred_region
      _
    $region25: #{dec_mtan_witouirr_forward.1} parent=1 // pred_fallthru
      _
    // Predicated region
    $region26: #{dec_mtan_witouirr_forward.1} parent=1 // pred_check
      _
    $region27: #{dec_mtan_witouirr_forward.1} parent=1 // pred_check_branch
      %145 = sbr.rel (0) target = $region29
    $region28: #{dec_mtan_witouirr_forward.1} parent=1 // pred_region
      _
    $region29: #{dec_mtan_witouirr_forward.1} parent=1 // pred_fallthru
      _
    %146 = vsyncpa [#allocation3], 1
    %147 = vsyncpa [#allocation5], 1

</llo_original>
